<compile_context>
chip_gen: v6e
topology: v6e:2x2x1
jax: 0.10.0
libtpu: 0.0.40
codegen_flags: <defaults>
</compile_context>

<pallas_src>
import functools

import jax
import jax.numpy as jnp
import numpy as np
from jax import lax
from jax.experimental import pallas as pl
from jax.experimental.pallas import tpu as pltpu


# --------------------------------------------------------------------------- #
# Helpers
# --------------------------------------------------------------------------- #

def _pick_tile(n, max_tile, multiple):
    """Largest multiple of `multiple` that divides n and is <= max_tile.

    Falls back to the full dimension (always a legal Pallas block) when no
    such divisor exists, so odd shapes stay correct (just untiled).
    """
    if n <= max_tile:
        return n
    t = (max_tile // multiple) * multiple
    while t >= multiple:
        if n % t == 0:
            return t
        t -= multiple
    return n


def _resident_spec(block_shape, index_map):
    """BlockSpec for a block whose index map is constant across the grid.

    Such blocks gain nothing from double buffering; a single buffer halves
    their VMEM footprint (matters for the [H,3H] fused projection weight on
    v5e's 16 MiB default scoped VMEM).  Falls back to a plain BlockSpec if the
    installed Pallas does not support pipeline_mode.
    """
    try:
        return pl.BlockSpec(block_shape, index_map, pipeline_mode=pl.Buffered(1))
    except Exception:  # pragma: no cover - older Pallas without pipeline_mode
        return pl.BlockSpec(block_shape, index_map)


# --------------------------------------------------------------------------- #
# Fused projection kernel:  y = x @ W_fused + b, split column-wise
# --------------------------------------------------------------------------- #

def _fused_linear_kernel(x_ref, w_ref, b_ref, *o_refs, out_dims, compute_dtype):
    x = x_ref[...].astype(compute_dtype)
    w = w_ref[...].astype(compute_dtype)
    y = jnp.dot(x, w, preferred_element_type=jnp.float32) + b_ref[...]
    off = 0
    for o_ref, d in zip(o_refs, out_dims):
        o_ref[...] = y[:, off:off + d].astype(o_ref.dtype)
        off += d


def pallas_fused_linear(x, w, b, out_dims, *, out_dtype=jnp.float32,
                        compute_dtype=jnp.float32, tile_m=256):
    """x: [..., H] @ w: [H, sum(out_dims)] + b -> tuple of [..., out_dims[i]].

    Row-tiled and software pipelined; weight/bias blocks are single-buffered
    residents.  One MXU pass over x produces all fused outputs directly as
    separate lane-dense arrays (no wrapper concats/slices over HBM).
    """
    lead = x.shape[:-1]
    H = x.shape[-1]
    D = w.shape[1]
    assert sum(out_dims) == D

    x2d = x.reshape(-1, H)
    N = x2d.shape[0]
    # Row tile: multiple of 8 sublanes; full block for odd small N.
    tm = min(tile_m, N) if N % 8 == 0 else N
    grid = (pl.cdiv(N, tm),)

    kernel = functools.partial(_fused_linear_kernel, out_dims=tuple(out_dims),
                               compute_dtype=compute_dtype)
    outs = pl.pallas_call(
        kernel,
        out_shape=tuple(jax.ShapeDtypeStruct((N, d), out_dtype)
                        for d in out_dims),
        grid=grid,
        in_specs=[
            pl.BlockSpec((tm, H), lambda i: (i, 0)),
            _resident_spec((H, D), lambda i: (0, 0)),   # fused weight, resident
            _resident_spec((1, D), lambda i: (0, 0)),   # bias, resident
        ],
        out_specs=tuple(pl.BlockSpec((tm, d), lambda i: (i, 0))
                        for d in out_dims),
        compiler_params=pltpu.CompilerParams(
            dimension_semantics=("parallel",)),
    )(x2d, w, b.reshape(1, D))
    return tuple(o.reshape(lead + (d,)) for o, d in zip(outs, out_dims))


# --------------------------------------------------------------------------- #
# Flash-style entity-aware attention kernel
# --------------------------------------------------------------------------- #

def _flash_attention_kernel(q_ref, kt_ref, vt_ref, ke_ref, ve_ref,
                            mt_ref, me_ref, o_ref,
                            acc_ref, m_ref, l_ref, *,
                            num_heads, head_dim, compute_dtype):
    """One (batch, q-tile, token-K-tile) grid step.

    Online-softmax accumulation over the token K/V tiles; the small entity
    K/V block (VMEM-resident) is folded in on the last K step, which also
    normalizes and writes the lane-dense (tq, H) output block.
    """
    ki = pl.program_id(2)
    nk = pl.num_programs(2)

    @pl.when(ki == 0)
    def _init():
        m_ref[...] = jnp.full_like(m_ref, -jnp.inf)
        l_ref[...] = jnp.zeros_like(l_ref)
        acc_ref[...] = jnp.zeros_like(acc_ref)

    q = q_ref[0]                     # (tq, H); 1/sqrt(d) folded into weights

    def accumulate(k_blk, v_blk, mask_blk):
        # Per-head online-softmax update against one K/V block.
        # TODO(synk): for head_dim=64 process heads in pairs so the q/k/v
        # slices and acc updates stay 128-lane aligned (avoids per-head
        # lane-relayout copies and underfilled MXU passes).
        for h in range(num_heads):
            lo = h * head_dim
            q_h = q[:, lo:lo + head_dim].astype(compute_dtype)
            k_h = k_blk[:, lo:lo + head_dim].astype(compute_dtype)
            v_h = v_blk[:, lo:lo + head_dim].astype(compute_dtype)

            # scores = q_h @ k_h^T, contracted on last dims (no explicit .T).
            s = lax.dot_general(
                q_h, k_h, dimension_numbers=(((1,), (1,)), ((), ())),
                preferred_element_type=jnp.float32)
            s = s + mask_blk                             # (tq, tk) + (1, tk)

            m_prev = m_ref[h]                            # (tq, 1)
            m_new = jnp.maximum(m_prev, jnp.max(s, axis=-1, keepdims=True))
            alpha = jnp.exp(m_prev - m_new)
            p = jnp.exp(s - m_new)
            l_ref[h] = alpha * l_ref[h] + jnp.sum(p, axis=-1, keepdims=True)
            m_ref[h] = m_new
            pv = jnp.dot(p.astype(compute_dtype), v_h,
                         preferred_element_type=jnp.float32)
            acc_ref[:, lo:lo + head_dim] = (
                alpha * acc_ref[:, lo:lo + head_dim] + pv)

    accumulate(kt_ref[0], vt_ref[0], mt_ref[0])          # token K/V tile

    @pl.when(ki == nk - 1)
    def _finalize():
        # Entity K/V segment (small, resident) folded in once per q tile.
        accumulate(ke_ref[0], ve_ref[0], me_ref[0])
        # torch: exp(log_softmax(s)) == softmax(s).  Exact divide at finalize
        # (once per q tile, so the non-approx reciprocal costs nothing).
        # nn.Dropout on attention probs is identity in eval mode.
        # TODO(synk): training-mode attention-probs dropout (RNG mask).
        for h in range(num_heads):
            lo = h * head_dim
            o_ref[0, :, lo:lo + head_dim] = (
                acc_ref[:, lo:lo + head_dim] / l_ref[h]).astype(o_ref.dtype)


def pallas_entity_aware_attention(q, k_tok, v_tok, k_ent, v_ent,
                                  mask_tok, mask_ent, *, num_heads,
                                  compute_dtype=jnp.float32,
                                  q_tile=256, k_tile=512):
    """q: [B, Lq, H] attending over keys/values = [token | entity] segments."""
    B, Lq, H = q.shape
    T = k_tok.shape[1]
    E = k_ent.shape[1]
    head_dim = H // num_heads

    tq = _pick_tile(Lq, q_tile, 8)      # sublane axis: multiple of 8 (or full)
    tk = _pick_tile(T, k_tile, 128)     # mask lane axis: multiple of 128 (or full)
    nq = pl.cdiv(Lq, tq)
    nk = pl.cdiv(T, tk)

    kernel = functools.partial(
        _flash_attention_kernel, num_heads=num_heads, head_dim=head_dim,
        compute_dtype=compute_dtype)

    return pl.pallas_call(
        kernel,
        out_shape=jax.ShapeDtypeStruct((B, Lq, H), jnp.float32),
        grid=(B, nq, nk),
        in_specs=[
            pl.BlockSpec((1, tq, H), lambda b, qi, ki: (b, qi, 0)),   # q tile
            pl.BlockSpec((1, tk, H), lambda b, qi, ki: (b, ki, 0)),   # token K
            pl.BlockSpec((1, tk, H), lambda b, qi, ki: (b, ki, 0)),   # token V
            pl.BlockSpec((1, E, H), lambda b, qi, ki: (b, 0, 0)),     # entity K (resident)
            pl.BlockSpec((1, E, H), lambda b, qi, ki: (b, 0, 0)),     # entity V (resident)
            pl.BlockSpec((1, 1, tk), lambda b, qi, ki: (b, 0, ki)),   # token mask
            pl.BlockSpec((1, 1, E), lambda b, qi, ki: (b, 0, 0)),     # entity mask (resident)
        ],
        out_specs=pl.BlockSpec((1, tq, H), lambda b, qi, ki: (b, qi, 0)),
        scratch_shapes=[
            pltpu.VMEM((tq, H), jnp.float32),              # context accumulator
            pltpu.VMEM((num_heads, tq, 1), jnp.float32),   # running max per head
            pltpu.VMEM((num_heads, tq, 1), jnp.float32),   # running denom per head
        ],
        compiler_params=pltpu.CompilerParams(
            dimension_semantics=("parallel", "parallel", "arbitrary")),
    )(q, k_tok, v_tok, k_ent, v_ent, mask_tok, mask_ent)


# --------------------------------------------------------------------------- #
# Module wrapper
# --------------------------------------------------------------------------- #

def prepare_params(params, *, num_heads, compute_dtype=jnp.float32):
    """One-time parameter prep (hoisted out of the per-step forward):
    fuse Q|K|V (and EQ|EK) weights, fold 1/sqrt(head_dim) into the Q
    projections, cast weights to the matmul dtype (bf16 on v6e/v7x halves
    weight DMA).  nn.Linear weights are expected in [in, out] layout."""
    H = params["q_w"].shape[0]
    head_dim = H // num_heads
    scale = jnp.float32(head_dim ** -0.5)
    w_tok = jnp.concatenate(
        [params["q_w"] * scale, params["k_w"], params["v_w"]], axis=1)   # [H,3H]
    b_tok = jnp.concatenate(
        [params["q_b"] * scale, params["k_b"], params["v_b"]])           # [3H]
    w_eqk = jnp.concatenate([params["eq_w"] * scale, params["ek_w"]], axis=1)
    b_eqk = jnp.concatenate([params["eq_b"] * scale, params["ek_b"]])
    return {
        "w_tok": w_tok.astype(compute_dtype), "b_tok": b_tok.astype(jnp.float32),
        "w_eqk": w_eqk.astype(compute_dtype), "b_eqk": b_eqk.astype(jnp.float32),
        "w_ev": params["ev_w"].astype(compute_dtype),
        "b_ev": params["ev_b"].astype(jnp.float32),
        "num_heads": num_heads,
        "compute_dtype": compute_dtype,
    }


def entity_aware_bert_self_attention(prepared, token_hidden_states,
                                     entity_hidden_states, attention_mask,
                                     query_pos=None):
    """Mirrors EntityAwareBertSelfAttention.forward (entity_aware_attention=True,
    eval mode).  Returns (token_context [B,T,H], entity_context [B,E,H])."""
    B, T, H = token_hidden_states.shape
    E = entity_hidden_states.shape[1]
    num_heads = prepared["num_heads"]
    cdt = prepared["compute_dtype"]

    pos_aware = entity_hidden_states
    if query_pos is not None:
        pos_aware = (entity_hidden_states + query_pos) * 0.5

    # Fused projections emitting separate lane-dense q/k/v arrays.
    q_tok, k_tok, v_tok = pallas_fused_linear(
        token_hidden_states, prepared["w_tok"], prepared["b_tok"], (H, H, H),
        out_dtype=cdt, compute_dtype=cdt)
    q_ent, k_ent = pallas_fused_linear(
        pos_aware, prepared["w_eqk"], prepared["b_eqk"], (H, H),
        out_dtype=cdt, compute_dtype=cdt)
    (v_ent,) = pallas_fused_linear(
        entity_hidden_states, prepared["w_ev"], prepared["b_ev"], (H,),
        out_dtype=cdt, compute_dtype=cdt)

    # Additive key mask split into the token / entity segments (tiny array).
    mask = attention_mask.reshape(B, 1, T + E).astype(jnp.float32)
    mask_tok = mask[:, :, :T]
    mask_ent = mask[:, :, T:]

    # Row-wise softmax over [tokens | entities] keys is independent per query
    # row, so token-query and entity-query attention are two separate calls
    # whose outputs are exactly the module's two return values.
    ctx_tok = pallas_entity_aware_attention(
        q_tok, k_tok, v_tok, k_ent, v_ent, mask_tok, mask_ent,
        num_heads=num_heads, compute_dtype=cdt)
    ctx_ent = pallas_entity_aware_attention(
        q_ent, k_tok, v_tok, k_ent, v_ent, mask_tok, mask_ent,
        num_heads=num_heads, compute_dtype=cdt)
    return ctx_tok, ctx_ent


# --------------------------------------------------------------------------- #
# Pure-JAX reference (mirrors the PyTorch module)
# --------------------------------------------------------------------------- #

def _transpose_for_scores(x, num_heads, head_dim):
    B, S, _ = x.shape
    return x.reshape(B, S, num_heads, head_dim).transpose(0, 2, 1, 3)


def _reference(params, tok, ent, mask, qpos, num_heads):
    H = tok.shape[-1]
    d = H // num_heads
    T = tok.shape[1]
    pos_aware = (ent + qpos) / 2.0 if qpos is not None else ent

    def lin(x, w, b):
        return x @ w + b

    q_all = jnp.concatenate(
        [lin(tok, params["q_w"], params["q_b"]),
         lin(pos_aware, params["eq_w"], params["eq_b"])], axis=1)
    k_all = jnp.concatenate(
        [lin(tok, params["k_w"], params["k_b"]),
         lin(pos_aware, params["ek_w"], params["ek_b"])], axis=1)
    v_all = jnp.concatenate(
        [lin(tok, params["v_w"], params["v_b"]),
         lin(ent, params["ev_w"], params["ev_b"])], axis=1)

    q = _transpose_for_scores(q_all, num_heads, d)
    k = _transpose_for_scores(k_all, num_heads, d)
    v = _transpose_for_scores(v_all, num_heads, d)
    scores = jnp.einsum("bhqd,bhkd->bhqk", q, k) / (d ** 0.5) + mask
    probs = jax.nn.softmax(scores, axis=-1)
    ctx = jnp.einsum("bhqk,bhkd->bhqd", probs, v)
    B, nH, S, dd = ctx.shape
    ctx = ctx.transpose(0, 2, 1, 3).reshape(B, S, nH * dd)
    return ctx[:, :T, :], ctx[:, T:, :]


# --------------------------------------------------------------------------- #
# Demo / self-check
# --------------------------------------------------------------------------- #

if __name__ == "__main__":
    key = jax.random.PRNGKey(0)
    B, T, E, H, nH = 2, 8, 4, 32, 4   # batch, token seq, entity queries, hidden, heads
    S = T + E

    keys = jax.random.split(key, 16)

    def w(k):
        return jax.random.normal(k, (H, H), jnp.float32) * 0.05

    def bias(k):
        return jax.random.normal(k, (H,), jnp.float32) * 0.05

    # nn.Linear weights stored as [in, out].
    params = {
        "q_w": w(keys[0]),  "q_b": bias(keys[1]),
        "k_w": w(keys[2]),  "k_b": bias(keys[3]),
        "v_w": w(keys[4]),  "v_b": bias(keys[5]),
        "eq_w": w(keys[6]), "eq_b": bias(keys[7]),
        "ek_w": w(keys[8]), "ek_b": bias(keys[9]),
        "ev_w": w(keys[10]), "ev_b": bias(keys[11]),
    }

    token_hidden = jax.random.normal(keys[12], (B, T, H), jnp.float32)
    entity_hidden = jax.random.normal(keys[13], (B, E, H), jnp.float32)
    query_pos = jax.random.normal(keys[14], (B, E, H), jnp.float32)

    # Standard BERT additive mask: 0 = keep, -10000 = masked.
    keep = jnp.ones((B, 1, 1, S), jnp.float32)
    keep = keep.at[1, 0, 0, T - 1].set(0.0)
    attention_mask = (1.0 - keep) * -10000.0

    ref_tok, ref_ent = _reference(params, token_hidden, entity_hidden,
                                  attention_mask, query_pos, nH)

    # f32 path: tight parity with the f32 reference.
    prep32 = prepare_params(params, num_heads=nH, compute_dtype=jnp.float32)
    tok_out, ent_out = entity_aware_bert_self_attention(
        prep32, token_hidden, entity_hidden, attention_mask, query_pos)
    tok_out = jax.block_until_ready(tok_out)
    ent_out = jax.block_until_ready(ent_out)
    assert tok_out.shape == (B, T, H) and ent_out.shape == (B, E, H)
    np.testing.assert_allclose(np.asarray(tok_out), np.asarray(ref_tok),
                               atol=1e-3, rtol=1e-3)
    np.testing.assert_allclose(np.asarray(ent_out), np.asarray(ref_ent),
                               atol=1e-3, rtol=1e-3)

    # bf16-producer path (perf configuration for v6e/v7x): q/k/v and weights
    # carried in bf16, softmax/accumulation in f32.  Loose sanity tolerance.
    prep16 = prepare_params(params, num_heads=nH, compute_dtype=jnp.bfloat16)
    tok16, ent16 = entity_aware_bert_self_attention(
        prep16, token_hidden, entity_hidden, attention_mask, query_pos)
    tok16 = jax.block_until_ready(tok16)
    ent16 = jax.block_until_ready(ent16)
    np.testing.assert_allclose(np.asarray(tok16), np.asarray(ref_tok),
                               atol=5e-2, rtol=5e-2)
    np.testing.assert_allclose(np.asarray(ent16), np.asarray(ref_ent),
                               atol=5e-2, rtol=5e-2)

    print("KERNEL_OK")
</pallas_src>

<mosaic_0001>
module attributes {stable_mosaic.version = 11 : i64} {
  func.func @_fused_linear_kernel(%arg0: i32, %arg1: memref<16x32xf32, #tpu.memory_space<vmem>>, %arg2: memref<32x96xf32, #tpu.memory_space<vmem>>, %arg3: memref<1x96xf32, #tpu.memory_space<vmem>>, %arg4: memref<16x32xf32, #tpu.memory_space<vmem>>, %arg5: memref<16x32xf32, #tpu.memory_space<vmem>>, %arg6: memref<16x32xf32, #tpu.memory_space<vmem>>) attributes {dimension_semantics = [#tpu.dimension_semantics<parallel>], iteration_bounds = array<i64: 1>, scalar_prefetch = 0 : i64, scratch_operands = 0 : i64, tpu.core_type = #tpu.core_type<tc>, window_params = [{transform_indices = @transform_0, window_bounds = array<i64: 16, 32>}, {pipeline_mode = #tpu.pipeline_mode<synchronous>, transform_indices = @transform_1, window_bounds = array<i64: 32, 96>}, {pipeline_mode = #tpu.pipeline_mode<synchronous>, transform_indices = @transform_2, window_bounds = array<i64: 1, 96>}, {transform_indices = @transform_3, window_bounds = array<i64: 16, 32>}, {transform_indices = @transform_4, window_bounds = array<i64: 16, 32>}, {transform_indices = @transform_5, window_bounds = array<i64: 16, 32>}]} {
    %c0 = arith.constant 0 : index
    %c0_0 = arith.constant 0 : index
    %0 = vector.load %arg1[%c0, %c0_0] : memref<16x32xf32, #tpu.memory_space<vmem>>, vector<16x32xf32>
    %c0_1 = arith.constant 0 : index
    %c0_2 = arith.constant 0 : index
    %1 = vector.load %arg2[%c0_1, %c0_2] : memref<32x96xf32, #tpu.memory_space<vmem>>, vector<32x96xf32>
    %cst = arith.constant dense<0.000000e+00> : vector<16x96xf32>
    %2 = tpu.matmul %0, %1, %cst {dimension_numbers = #tpu.dot_dimension_numbers<[1], [0], [0], [1], [0, 0, 1, 1], [], []>} : vector<16x32xf32>, vector<32x96xf32>, vector<16x96xf32> -> vector<16x96xf32>
    %c0_3 = arith.constant 0 : index
    %c0_4 = arith.constant 0 : index
    %3 = vector.load %arg3[%c0_3, %c0_4] : memref<1x96xf32, #tpu.memory_space<vmem>>, vector<1x96xf32>
    %4 = vector.broadcast %3 : vector<1x96xf32> to vector<16x96xf32>
    %5 = arith.addf %2, %4 : vector<16x96xf32>
    %6 = vector.extract_strided_slice %5 {offsets = [0, 0], sizes = [16, 32], strides = [1, 1]} : vector<16x96xf32> to vector<16x32xf32>
    %c0_5 = arith.constant 0 : index
    %c0_6 = arith.constant 0 : index
    %7 = vector.load %arg4[%c0_5, %c0_6] : memref<16x32xf32, #tpu.memory_space<vmem>>, vector<16x32xf32>
    tpu.vector_store %arg4[%c0_5, %c0_6], %6 {strides = array<i32>} : memref<16x32xf32, #tpu.memory_space<vmem>>, vector<16x32xf32>,
    %8 = vector.extract_strided_slice %5 {offsets = [0, 32], sizes = [16, 32], strides = [1, 1]} : vector<16x96xf32> to vector<16x32xf32>
    %c0_7 = arith.constant 0 : index
    %c0_8 = arith.constant 0 : index
    %9 = vector.load %arg5[%c0_7, %c0_8] : memref<16x32xf32, #tpu.memory_space<vmem>>, vector<16x32xf32>
    tpu.vector_store %arg5[%c0_7, %c0_8], %8 {strides = array<i32>} : memref<16x32xf32, #tpu.memory_space<vmem>>, vector<16x32xf32>,
    %10 = vector.extract_strided_slice %5 {offsets = [0, 64], sizes = [16, 32], strides = [1, 1]} : vector<16x96xf32> to vector<16x32xf32>
    %c0_9 = arith.constant 0 : index
    %c0_10 = arith.constant 0 : index
    %11 = vector.load %arg6[%c0_9, %c0_10] : memref<16x32xf32, #tpu.memory_space<vmem>>, vector<16x32xf32>
    tpu.vector_store %arg6[%c0_9, %c0_10], %10 {strides = array<i32>} : memref<16x32xf32, #tpu.memory_space<vmem>>, vector<16x32xf32>,
    return
  }
  func.func @transform_0(%arg0: i32) -> (i32, i32) {
    %c0_i32 = arith.constant 0 : i32
    %c0_i32_0 = arith.constant 0 : i32
    return %arg0, %c0_i32 : i32, i32
  }
  func.func @transform_1(%arg0: i32) -> (i32, i32) {
    %c0_i32 = arith.constant 0 : i32
    %c0_i32_0 = arith.constant 0 : i32
    %c0_i32_1 = arith.constant 0 : i32
    return %c0_i32, %c0_i32_0 : i32, i32
  }
  func.func @transform_2(%arg0: i32) -> (i32, i32) {
    %c0_i32 = arith.constant 0 : i32
    %c0_i32_0 = arith.constant 0 : i32
    %c0_i32_1 = arith.constant 0 : i32
    return %c0_i32, %c0_i32_0 : i32, i32
  }
  func.func @transform_3(%arg0: i32) -> (i32, i32) {
    %c0_i32 = arith.constant 0 : i32
    %c0_i32_0 = arith.constant 0 : i32
    return %arg0, %c0_i32 : i32, i32
  }
  func.func @transform_4(%arg0: i32) -> (i32, i32) {
    %c0_i32 = arith.constant 0 : i32
    %c0_i32_0 = arith.constant 0 : i32
    return %arg0, %c0_i32 : i32, i32
  }
  func.func @transform_5(%arg0: i32) -> (i32, i32) {
    %c0_i32 = arith.constant 0 : i32
    %c0_i32_0 = arith.constant 0 : i32
    return %arg0, %c0_i32 : i32, i32
  }
}

</mosaic_0001>

<llo_original>
// kernel: tpu_custom_call.1
$region0: #{tpu_custom_call.1}
  #allocation0 [shape = 'u32[]', space=smem, size = 0x4, offset = 0x4, fixed_abs, tag = 'smem constant byte address 0x4 - core index']
  #allocation1 [shape = 'u32[144,128]{1,0:T(1,128)}', space=vmem, size = 0x12000, scoped, tag = 'internal scratch']
  %s0 = inlined_call_operand.hbm [shape: f32[16,32], index: 0, kind: input, shape index: {}]
  %s1 = inlined_call_operand.hbm [shape: f32[32,96], index: 1, kind: input, shape index: {}]
  %s2 = inlined_call_operand.vmem [shape: f32[1,96], index: 2, kind: input, shape index: {}]
  %s3 = inlined_call_operand.hbm [shape: f32[16,32], index: 3, kind: output, shape index: {0}]
  %s4 = inlined_call_operand.hbm [shape: f32[16,32], index: 4, kind: output, shape index: {1}]
  %s5 = inlined_call_operand.hbm [shape: f32[16,32], index: 5, kind: output, shape index: {2}]
  %6 = xla_tuple %s3, %s4, %s5
  %s7 = sld [smem:[#allocation0]]
  $region46: #{tpu_custom_call.1} parent=0
    _
  %s9 = ssub.s32 1, %s7
  %s10 = scalar_select 0, %s9, %s7
  $region1: #{tpu_custom_call.1} parent=0
    #allocation2 [shape = 'u8[8192]{0}', space=vmem, size = 0x2000, scoped, tag = 'input window, operand 0, single buffered']
    #allocation3 [shape = 's32[1]{0}', space=sflag, size = 0x4, scoped, tag = 'scoped memory for tpu_custom_call.1']
    #allocation4 [shape = 's32[1]{0}', space=sflag, size = 0x4, scoped, tag = 'scoped memory for tpu_custom_call.1']
    #allocation5 [shape = 'u8[16384]{0}', space=vmem, size = 0x4000, scoped, tag = 'input window, operand 1, single buffered']
    #allocation6 [shape = 's32[1]{0}', space=sflag, size = 0x4, scoped, tag = 'scoped memory for tpu_custom_call.1']
    #allocation7 [shape = 'u8[8192]{0}', space=vmem, size = 0x2000, scoped, tag = 'output window, operand 0, single buffered']
    #allocation8 [shape = 'u8[8192]{0}', space=vmem, size = 0x2000, scoped, tag = 'output window, operand 1, single buffered']
    #allocation9 [shape = 's32[1]{0}', space=sflag, size = 0x4, scoped, tag = 'scoped memory for tpu_custom_call.1']
    #allocation10 [shape = 'u8[8192]{0}', space=vmem, size = 0x2000, scoped, tag = 'output window, operand 2, single buffered']
    %11 = vsyncpa [#allocation3], 0
    %12 = vsyncpa [#allocation6], 0
    %13 = vsyncpa [#allocation4], 0
    %14 = vsyncpa [#allocation9], 0
    // Predicated region
    $region2: #{tpu_custom_call.1} parent=1 // pred_check
      _
    $region3: #{tpu_custom_call.1} parent=1 // pred_check_branch
      %16 = sbr.rel (0) target = $region5
    $region4: #{tpu_custom_call.1} parent=1 // pred_region
      %s18 = ssub.s32 256, 256
      %19 = vsyncadd [#allocation3], %s18
      %s20 = sshll.u32 [#allocation2], 4
      %s21 = int_to_ptr.vmem [resolvable:$true] %s20
      %26 = dma.hbm_to_vmem [thread:$0]  %s0, 256, %s21, [#allocation3], 128, 128, 8
    $region5: #{tpu_custom_call.1} parent=1 // pred_fallthru
      _
    // Predicated region
    $region6: #{tpu_custom_call.1} parent=1 // pred_check
      _
    $region7: #{tpu_custom_call.1} parent=1 // pred_check_branch
      %28 = sbr.rel (0) target = $region9
    $region8: #{tpu_custom_call.1} parent=1 // pred_region
      %s30 = ssub.s32 512, 512
      %31 = vsyncadd [#allocation6], %s30
      %s32 = sshll.u32 [#allocation5], 4
      %s33 = int_to_ptr.vmem [resolvable:$true] %s32
      %38 = dma.hbm_to_vmem [thread:$0]  %s1, 512, %s33, [#allocation6], 128, 128, 8
    $region9: #{tpu_custom_call.1} parent=1 // pred_fallthru
      _
    // Predicated region
    $region10: #{tpu_custom_call.1} parent=1 // pred_check
      _
    $region11: #{tpu_custom_call.1} parent=1 // pred_check_branch
      %40 = sbr.rel (0) target = $region13
    $region12: #{tpu_custom_call.1} parent=1 // pred_region
      _
    $region13: #{tpu_custom_call.1} parent=1 // pred_fallthru
      _
    // Predicated region
    $region14: #{tpu_custom_call.1} parent=1 // pred_check
      _
    $region15: #{tpu_custom_call.1} parent=1 // pred_check_branch
      %42 = sbr.rel (0) target = $region17
    $region16: #{tpu_custom_call.1} parent=1 // pred_region
      %43 = dma.done [#allocation3], 256
    $region17: #{tpu_custom_call.1} parent=1 // pred_fallthru
      _
    // Predicated region
    $region18: #{tpu_custom_call.1} parent=1 // pred_check
      _
    $region19: #{tpu_custom_call.1} parent=1 // pred_check_branch
      %45 = sbr.rel (0) target = $region21
    $region20: #{tpu_custom_call.1} parent=1 // pred_region
      %46 = dma.done [#allocation6], 512
    $region21: #{tpu_custom_call.1} parent=1 // pred_fallthru
      _
    %v47 = vld [vmem:[#allocation2] sm:$0xff]
    %v48 = vld [vmem:[#allocation2 + $0x8] sm:$0xff]
    %v49 = vld [vmem:[#allocation5] sm:$0xff]
    %v50 = vld [vmem:[#allocation5 + $0x8] sm:$0xff]
    %v51 = vld [vmem:[#allocation5 + $0x10] sm:$0xff]
    %v52 = vld [vmem:[#allocation5 + $0x18] sm:$0xff]
    %v53 = vld [vmem:[%s2] sm:$0x1]
    %v55 = vlaneseq
    %v56 = vshrl.u32 %v55, 7
    %v57 = vsub.s32 0, %v56
    %v58 = vrot.slane %v53, %v57
    %vm60 = vcmask 261120
    %v62 = vsel %vm60, %v47, 0
    %v65 = vsel %vm60, %v48, 0
    %67 = vmatprep.subr.mxu0 0.0
    %68 = vmatpush1.msra.mxu0 0.0
    %69 = vmatprep.subr.mxu0 0.0
    %70 = vmatpush1.msra.mxu0 0.0
    %71 = vmatprep.subr.mxu0 0.0
    %72 = vmatpush1.msra.mxu0 0.0
    %73 = vmatprep.subr.mxu0 0.0
    %74 = vmatpush1.msra.mxu0 0.0
    %75 = vmatprep.subr.mxu0 0.0
    %76 = vmatpush1.msra.mxu0 0.0
    %77 = vmatprep.subr.mxu0 0.0
    %78 = vmatpush1.msra.mxu0 0.0
    %79 = vmatprep.subr.mxu0 0.0
    %80 = vmatpush1.msra.mxu0 0.0
    %81 = vmatprep.subr.mxu0 0.0
    %82 = vmatpush1.msra.mxu0 0.0
    %83 = vmatprep.subr.mxu0 0.0
    %84 = vmatpush1.msra.mxu0 0.0
    %85 = vmatprep.subr.mxu0 0.0
    %86 = vmatpush1.msra.mxu0 0.0
    %87 = vmatprep.subr.mxu0 0.0
    %88 = vmatpush1.msra.mxu0 0.0
    %89 = vmatprep.subr.mxu0 0.0
    %90 = vmatpush1.msra.mxu0 0.0
    %91 = vmatprep.subr.mxu0 0.0
    %92 = vmatpush1.msra.mxu0 %v52
    %93 = vmatprep.subr.mxu0 0.0
    %94 = vmatpush1.msra.mxu0 %v51
    %95 = vmatprep.subr.mxu0 0.0
    %96 = vmatpush1.msra.mxu0 %v50
    %97 = vmatprep.subr.mxu0 0.0
    %98 = vmatpush1.msra.mxu0 %v49
    %99 = vmatprep.subr.mxu0 0.0
    %100 = vmatpush2.msra.mxu0 0.0
    %101 = vmatprep.subr.mxu0 0.0
    %102 = vmatpush2.msra.mxu0 0.0
    %103 = vmatprep.subr.mxu0 0.0
    %104 = vmatpush2.msra.mxu0 0.0
    %105 = vmatprep.subr.mxu0 0.0
    %106 = vmatpush2.msra.mxu0 0.0
    %107 = vmatprep.subr.mxu0 0.0
    %108 = vmatpush2.msra.mxu0 0.0
    %109 = vmatprep.subr.mxu0 0.0
    %110 = vmatpush2.msra.mxu0 0.0
    %111 = vmatprep.subr.mxu0 0.0
    %112 = vmatpush2.msra.mxu0 0.0
    %113 = vmatprep.subr.mxu0 0.0
    %114 = vmatpush2.msra.mxu0 0.0
    %115 = vmatprep.subr.mxu0 0.0
    %116 = vmatpush2.msra.mxu0 0.0
    %117 = vmatprep.subr.mxu0 0.0
    %118 = vmatpush2.msra.mxu0 0.0
    %119 = vmatprep.subr.mxu0 0.0
    %120 = vmatpush2.msra.mxu0 0.0
    %121 = vmatprep.subr.mxu0 0.0
    %122 = vmatpush2.msra.mxu0 0.0
    %123 = vmatprep.subr.mxu0 0.0
    %124 = vmatpush2.msra.mxu0 0.0
    %125 = vmatprep.subr.mxu0 0.0
    %126 = vmatpush2.msra.mxu0 0.0
    %127 = vmatprep.subr.mxu0 0.0
    %128 = vmatpush2.msra.mxu0 0.0
    %129 = vmatprep.subr.mxu0 0.0
    %130 = vmatpush2.msra.mxu0 0.0
    %131 = vmatprep.mubr.f32.mxu0 0.0
    %132 = vmatmul.mubr.f32.gmra.mxu0 %v62
    %v133 = vpop.f32.mrf.mxu0
    %v134 = vadd.f32 %v58, %v133
    %v135 = vpop.f32.mrf.mxu0
    %136 = vmatprep.mubr.f32.mxu0 0.0
    %137 = vmatmul.mubr.f32.gmra.mxu0 %v65
    %v138 = vpop.f32.mrf.mxu0
    %v139 = vadd.f32 %v58, %v138
    %v140 = vpop.f32.mrf.mxu0
    %141 = vdwg.mxu0
    %142 = vst.msk [vmem:[#allocation7] sm:$0xff] %vm60, %v134
    %143 = vst.msk [vmem:[#allocation7 + $0x8] sm:$0xff] %vm60, %v139
    %146 = vrot.lane.b32.xlu0 %v134, 96
    %v147 = vpop.permute.xlu0 %146
    %148 = vrot.lane.b32.xlu0 %v139, 96
    %v149 = vpop.permute.xlu0 %148
    %152 = vst.msk [vmem:[#allocation8] sm:$0xff] %vm60, %v147
    %153 = vst.msk [vmem:[#allocation8 + $0x8] sm:$0xff] %vm60, %v149
    %154 = vrot.lane.b32.xlu0 %v134, 64
    %v155 = vpop.permute.xlu0 %154
    %156 = vrot.lane.b32.xlu0 %v139, 64
    %v157 = vpop.permute.xlu0 %156
    %160 = vst.msk [vmem:[#allocation10] sm:$0xff] %vm60, %v155
    %161 = vst.msk [vmem:[#allocation10 + $0x8] sm:$0xff] %vm60, %v157
    // Predicated region
    $region22: #{tpu_custom_call.1} parent=1 // pred_check
      _
    $region23: #{tpu_custom_call.1} parent=1 // pred_check_branch
      %163 = sbr.rel (0) target = $region25
    $region24: #{tpu_custom_call.1} parent=1 // pred_region
      %s165 = ssub.s32 256, 256
      %166 = vsyncadd [#allocation4], %s165
      %s167 = sshll.u32 [#allocation7], 4
      %s168 = int_to_ptr.vmem [resolvable:$true] %s167
      %173 = dma.vmem_to_hbm [thread:$0]  %s168, 256, %s3, [#allocation4], 128, 128, 8
    $region25: #{tpu_custom_call.1} parent=1 // pred_fallthru
      _
    // Predicated region
    $region26: #{tpu_custom_call.1} parent=1 // pred_check
      _
    $region27: #{tpu_custom_call.1} parent=1 // pred_check_branch
      %175 = sbr.rel (0) target = $region29
    $region28: #{tpu_custom_call.1} parent=1 // pred_region
      %s177 = ssub.s32 256, 256
      %178 = vsyncadd [#allocation9], %s177
      %s179 = sshll.u32 [#allocation8], 4
      %s180 = int_to_ptr.vmem [resolvable:$true] %s179
      %185 = dma.vmem_to_hbm [thread:$0]  %s180, 256, %s4, [#allocation9], 128, 128, 8
    $region29: #{tpu_custom_call.1} parent=1 // pred_fallthru
      _
    // Predicated region
    $region30: #{tpu_custom_call.1} parent=1 // pred_check
      _
    $region31: #{tpu_custom_call.1} parent=1 // pred_check_branch
      %187 = sbr.rel (0) target = $region33
    $region32: #{tpu_custom_call.1} parent=1 // pred_region
      %s189 = ssub.s32 256, 256
      %190 = vsyncadd [#allocation9], %s189
      %s191 = sshll.u32 [#allocation10], 4
      %s192 = int_to_ptr.vmem [resolvable:$true] %s191
      %197 = dma.vmem_to_hbm [thread:$0]  %s192, 256, %s5, [#allocation9], 128, 128, 8
    $region33: #{tpu_custom_call.1} parent=1 // pred_fallthru
      _
    // Predicated region
    $region34: #{tpu_custom_call.1} parent=1 // pred_check
      _
    $region35: #{tpu_custom_call.1} parent=1 // pred_check_branch
      %199 = sbr.rel (0) target = $region37
    $region36: #{tpu_custom_call.1} parent=1 // pred_region
      %200 = dma.done [#allocation4], 256
    $region37: #{tpu_custom_call.1} parent=1 // pred_fallthru
      _
    // Predicated region
    $region38: #{tpu_custom_call.1} parent=1 // pred_check
      _
    $region39: #{tpu_custom_call.1} parent=1 // pred_check_branch
      %202 = sbr.rel (0) target = $region41
    $region40: #{tpu_custom_call.1} parent=1 // pred_region
      %203 = dma.done [#allocation9], 256
    $region41: #{tpu_custom_call.1} parent=1 // pred_fallthru
      _
    // Predicated region
    $region42: #{tpu_custom_call.1} parent=1 // pred_check
      _
    $region43: #{tpu_custom_call.1} parent=1 // pred_check_branch
      %205 = sbr.rel (0) target = $region45
    $region44: #{tpu_custom_call.1} parent=1 // pred_region
      %206 = dma.done [#allocation9], 256
    $region45: #{tpu_custom_call.1} parent=1 // pred_fallthru
      _
    %207 = vsyncpa [#allocation3], 1
    %208 = vsyncpa [#allocation6], 1
    %209 = vsyncpa [#allocation4], 1
    %210 = vsyncpa [#allocation9], 1

</llo_original>
